<compile_context>
chip_gen: v6e
topology: v6e:2x2x1
jax: 0.10.0
libtpu: 0.0.40
codegen_flags: <defaults>
</compile_context>

<pallas_src>
import functools

import jax
import jax.numpy as jnp
from jax.experimental import pallas as pl
from jax.experimental.pallas import tpu as pltpu


# ----------------------------------------------------------------------------
# Fused Pallas kernel (all operands are whole-array VMEM blocks; no grid)
# ----------------------------------------------------------------------------

def _relu_layernorm(x, gamma, beta, eps=1e-5):
    """ReLU then LayerNorm over the last (hidden) dim."""
    x = jnp.maximum(x, 0.0)
    mean = jnp.mean(x, axis=-1, keepdims=True)
    var = jnp.mean((x - mean) ** 2, axis=-1, keepdims=True)
    return (x - mean) * jax.lax.rsqrt(var + eps) * gamma + beta


def fused_gnn_kernel(x_ref, adj_ref, pool_ref,
                     w0_ref, bs0_ref, bn0_ref,
                     w1_ref, bs1_ref, bn1_ref,
                     w2_ref, bs2_ref, bn2_ref,
                     g0_ref, be0_ref, g1_ref, be1_ref,
                     pw1_ref, pb1_ref, pw2_ref, pb2_ref,
                     o_ref):
    H = bs1_ref.shape[1]

    x = x_ref[...]                       # [N, Din]
    adj = adj_ref[...]                   # [N, N]
    deg = jnp.sum(adj, axis=-1, keepdims=True)   # [N, 1]

    # ---- layer 0: reassociated neighbor path, single stacked matmul --------
    # out = x@Ws0 + bs0 + A@(x@Wn0 + bn0)
    #     = [x | A@x] @ [[Ws0],[Wn0]] + bs0 + deg*bn0
    ax = jnp.dot(adj, x, preferred_element_type=jnp.float32)        # [N, Din]
    xc = jnp.concatenate([x, ax], axis=-1)                          # [N, 2*Din]
    h = jnp.dot(xc, w0_ref[...], preferred_element_type=jnp.float32)
    h = h + bs0_ref[...] + deg * bn0_ref[...]
    h = _relu_layernorm(h, g0_ref[...], be0_ref[...])               # relu+dropout(id)+LN

    # ---- layer 1: concatenated [W_self | W_nbr] matmul ----------------------
    z = jnp.dot(h, w1_ref[...], preferred_element_type=jnp.float32)  # [N, 2H]
    own = z[:, :H] + bs1_ref[...]
    msg = z[:, H:] + bn1_ref[...]
    h = own + jnp.dot(adj, msg, preferred_element_type=jnp.float32)
    h = _relu_layernorm(h, g1_ref[...], be1_ref[...])

    # ---- layer 2: concatenated weights, relu only (no LN after last conv) ---
    z = jnp.dot(h, w2_ref[...], preferred_element_type=jnp.float32)  # [N, 2H]
    own = z[:, :H] + bs2_ref[...]
    msg = z[:, H:] + bn2_ref[...]
    h = own + jnp.dot(adj, msg, preferred_element_type=jnp.float32)
    h = jnp.maximum(h, 0.0)                                          # relu + dropout(id)

    # ---- global mean pool as matmul with precomputed P ----------------------
    g = jnp.dot(pool_ref[...], h, preferred_element_type=jnp.float32)  # [G, H]

    # ---- post_mp: Linear -> (dropout: identity) -> Linear -> log_softmax ----
    p = jnp.dot(g, pw1_ref[...], preferred_element_type=jnp.float32) + pb1_ref[...]
    y = jnp.dot(p, pw2_ref[...], preferred_element_type=jnp.float32) + pb2_ref[...]
    m = jnp.max(y, axis=-1, keepdims=True)
    zc = y - m
    lse = jnp.log(jnp.sum(jnp.exp(zc), axis=-1, keepdims=True))
    o_ref[...] = zc - lse


# ----------------------------------------------------------------------------
# Graph preprocessing (plain JAX glue, done once per call under jit)
# ----------------------------------------------------------------------------

def build_adjacency(edge_index, num_nodes):
    """Dense adjacency with A[dst, src] += 1, self-loops removed (as in CustomConv)."""
    src, dst = edge_index[0], edge_index[1]
    vals = (src != dst).astype(jnp.float32)
    return jnp.zeros((num_nodes, num_nodes), jnp.float32).at[dst, src].add(vals)


def build_pool_matrix(batch, num_graphs, num_nodes):
    """P[g, n] = 1/|graph g| if batch[n] == g else 0 (mean pooling)."""
    onehot = (batch[None, :] == jnp.arange(num_graphs)[:, None]).astype(jnp.float32)
    counts = jnp.maximum(onehot.sum(axis=1, keepdims=True), 1.0)
    return onehot / counts


# ----------------------------------------------------------------------------
# Forward: one fused pallas_call
# ----------------------------------------------------------------------------

def gnn_stack_forward(params, x, edge_index, batch, num_graphs):
    N, Din = x.shape
    H = params["convs"][1]["w_self"].shape[0]
    O = params["post_mp"]["w2"].shape[1]
    G = num_graphs

    adj = build_adjacency(edge_index, N)
    pool_mat = build_pool_matrix(batch, G, N)

    c0, c1, c2 = params["convs"]
    # Layer 0: vertically stacked [[W_self],[W_nbr]] to pair with [x | A@x].
    w0 = jnp.concatenate([c0["w_self"], c0["w_nbr"]], axis=0)   # [2*Din, H]
    # Layers 1/2: horizontally concatenated [W_self | W_nbr].
    w1 = jnp.concatenate([c1["w_self"], c1["w_nbr"]], axis=1)   # [H, 2H]
    w2 = jnp.concatenate([c2["w_self"], c2["w_nbr"]], axis=1)   # [H, 2H]

    ln0, ln1 = params["lns"]
    pm = params["post_mp"]

    args = (x, adj, pool_mat,
            w0, c0["b_self"], c0["b_nbr"],
            w1, c1["b_self"], c1["b_nbr"],
            w2, c2["b_self"], c2["b_nbr"],
            ln0["gamma"], ln0["beta"], ln1["gamma"], ln1["beta"],
            pm["w1"], pm["b1"], pm["w2"], pm["b2"])

    flops = 2 * (N * N * Din + N * (2 * Din) * H            # layer 0
                 + 2 * (N * H * (2 * H) + N * N * H)         # layers 1, 2
                 + G * N * H + G * H * H + G * H * O)        # pool + post_mp
    bytes_accessed = sum(int(a.size) * a.dtype.itemsize for a in args) + G * O * 4
    cost = pl.CostEstimate(flops=flops,
                           transcendentals=G * O + 3 * N,
                           bytes_accessed=bytes_accessed)

    vmem = pl.BlockSpec(memory_space=pltpu.MemorySpace.VMEM)
    return pl.pallas_call(
        fused_gnn_kernel,
        out_shape=jax.ShapeDtypeStruct((G, O), jnp.float32),
        in_specs=[vmem] * len(args),
        out_specs=vmem,
        cost_estimate=cost,
    )(*args)


# ----------------------------------------------------------------------------
# Pure-JAX reference (for correctness check) + parameter construction
# ----------------------------------------------------------------------------

def gnn_stack_reference(params, x, edge_index, batch, num_graphs):
    N = x.shape[0]
    adj = build_adjacency(edge_index, N)
    pool_mat = build_pool_matrix(batch, num_graphs, N)
    h = x
    for i, c in enumerate(params["convs"]):
        own = h @ c["w_self"] + c["b_self"]
        msg = h @ c["w_nbr"] + c["b_nbr"]
        h = own + adj @ msg
        h = jnp.maximum(h, 0.0)
        if i != 2:
            ln = params["lns"][i]
            mean = h.mean(-1, keepdims=True)
            var = ((h - mean) ** 2).mean(-1, keepdims=True)
            h = (h - mean) / jnp.sqrt(var + 1e-5) * ln["gamma"] + ln["beta"]
    g = pool_mat @ h
    pm = params["post_mp"]
    y = (g @ pm["w1"] + pm["b1"]) @ pm["w2"] + pm["b2"]
    return jax.nn.log_softmax(y, axis=1)


def init_params(key, input_dim, hidden_dim, output_dim):
    params = {}
    dims = [(input_dim, hidden_dim), (hidden_dim, hidden_dim), (hidden_dim, hidden_dim)]
    keys = jax.random.split(key, 16)
    k = iter(keys)

    convs = []
    for (din, dout) in dims:
        convs.append(dict(
            w_self=0.1 * jax.random.normal(next(k), (din, dout), jnp.float32),
            b_self=0.1 * jax.random.normal(next(k), (1, dout), jnp.float32),
            w_nbr=0.1 * jax.random.normal(next(k), (din, dout), jnp.float32),
            b_nbr=0.1 * jax.random.normal(next(k), (1, dout), jnp.float32),
        ))
    params["convs"] = convs

    params["lns"] = [dict(gamma=jnp.ones((1, hidden_dim), jnp.float32),
                          beta=jnp.zeros((1, hidden_dim), jnp.float32))
                     for _ in range(2)]

    params["post_mp"] = dict(
        w1=0.1 * jax.random.normal(next(k), (hidden_dim, hidden_dim), jnp.float32),
        b1=0.1 * jax.random.normal(next(k), (1, hidden_dim), jnp.float32),
        w2=0.1 * jax.random.normal(next(k), (hidden_dim, output_dim), jnp.float32),
        b2=0.1 * jax.random.normal(next(k), (1, output_dim), jnp.float32),
    )
    return params


# ----------------------------------------------------------------------------
# Demo
# ----------------------------------------------------------------------------

if __name__ == "__main__":
    input_dim, hidden_dim, output_dim = 8, 32, 4
    num_nodes, num_edges, num_graphs = 16, 40, 2

    key = jax.random.PRNGKey(0)
    k_x, k_e, k_p = jax.random.split(key, 3)

    x = jax.random.normal(k_x, (num_nodes, input_dim), jnp.float32)
    edge_index = jax.random.randint(k_e, (2, num_edges), 0, num_nodes, jnp.int32)
    batch = jnp.concatenate([
        jnp.zeros((num_nodes // 2,), jnp.int32),
        jnp.ones((num_nodes - num_nodes // 2,), jnp.int32),
    ])

    params = init_params(k_p, input_dim, hidden_dim, output_dim)

    fwd = jax.jit(functools.partial(gnn_stack_forward, num_graphs=num_graphs))
    out = jax.block_until_ready(fwd(params, x, edge_index, batch))

    ref = gnn_stack_reference(params, x, edge_index, batch, num_graphs)

    assert out.shape == (num_graphs, output_dim)
    # rows of log_softmax must exp-sum to 1
    assert jnp.allclose(jnp.exp(out).sum(axis=1), 1.0, atol=1e-4)
    # fused kernel must match the pure-JAX reference
    assert jnp.allclose(out, ref, atol=1e-4, rtol=1e-4)
    print("KERNEL_OK")
</pallas_src>

<mosaic_0001>
module attributes {stable_mosaic.version = 11 : i64} {
  func.func private @main(%arg0: i32) attributes {dimension_semantics = [#tpu.dimension_semantics<core_parallel>], iteration_bounds = array<i64: 2>, tpu.core_type = #tpu.core_type<sc_scalar_subcore>, window_params = []} {
    return
  }
}

module attributes {stable_mosaic.version = 11 : i64} {
  func.func private @main(%arg0: i32) attributes {dimension_semantics = [#tpu.dimension_semantics<core_parallel>], iteration_bounds = array<i64: 2>, tpu.core_type = #tpu.core_type<sc_scalar_subcore>, window_params = []} {
    return
  }
}

module attributes {stable_mosaic.version = 11 : i64} {
  func.func @fused_gnn_kernel(%arg0: memref<16x8xf32, #tpu.memory_space<vmem>>, %arg1: memref<16x16xf32, #tpu.memory_space<vmem>>, %arg2: memref<2x16xf32, #tpu.memory_space<vmem>>, %arg3: memref<16x32xf32, #tpu.memory_space<vmem>>, %arg4: memref<1x32xf32, #tpu.memory_space<vmem>>, %arg5: memref<1x32xf32, #tpu.memory_space<vmem>>, %arg6: memref<32x64xf32, #tpu.memory_space<vmem>>, %arg7: memref<1x32xf32, #tpu.memory_space<vmem>>, %arg8: memref<1x32xf32, #tpu.memory_space<vmem>>, %arg9: memref<32x64xf32, #tpu.memory_space<vmem>>, %arg10: memref<1x32xf32, #tpu.memory_space<vmem>>, %arg11: memref<1x32xf32, #tpu.memory_space<vmem>>, %arg12: memref<1x32xf32, #tpu.memory_space<vmem>>, %arg13: memref<1x32xf32, #tpu.memory_space<vmem>>, %arg14: memref<1x32xf32, #tpu.memory_space<vmem>>, %arg15: memref<1x32xf32, #tpu.memory_space<vmem>>, %arg16: memref<32x32xf32, #tpu.memory_space<vmem>>, %arg17: memref<1x32xf32, #tpu.memory_space<vmem>>, %arg18: memref<32x4xf32, #tpu.memory_space<vmem>>, %arg19: memref<1x4xf32, #tpu.memory_space<vmem>>, %arg20: memref<2x4xf32, #tpu.memory_space<vmem>>) attributes {dimension_semantics = [], scalar_prefetch = 0 : i64, scratch_operands = 0 : i64, tpu.core_type = #tpu.core_type<tc>} {
    %c0 = arith.constant 0 : index
    %c0_0 = arith.constant 0 : index
    %0 = vector.load %arg0[%c0, %c0_0] : memref<16x8xf32, #tpu.memory_space<vmem>>, vector<16x8xf32>
    %c0_1 = arith.constant 0 : index
    %c0_2 = arith.constant 0 : index
    %1 = vector.load %arg1[%c0_1, %c0_2] : memref<16x16xf32, #tpu.memory_space<vmem>>, vector<16x16xf32>
    %cst = arith.constant dense<0.000000e+00> : vector<16xf32>
    %2 = vector.multi_reduction <add>, %1, %cst [1] : vector<16x16xf32> to vector<16xf32>
    %3 = vector.shape_cast %2 : vector<16xf32> to vector<16x1xf32>
    %cst_3 = arith.constant dense<0.000000e+00> : vector<16x8xf32>
    %4 = tpu.matmul %1, %0, %cst_3 {dimension_numbers = #tpu.dot_dimension_numbers<[1], [0], [0], [1], [0, 0, 1, 1], [], []>} : vector<16x16xf32>, vector<16x8xf32>, vector<16x8xf32> -> vector<16x8xf32>
    %5 = tpu.concatenate %0, %4 in 1 : vector<16x8xf32>, vector<16x8xf32> -> vector<16x16xf32>
    %c0_4 = arith.constant 0 : index
    %c0_5 = arith.constant 0 : index
    %6 = vector.load %arg3[%c0_4, %c0_5] : memref<16x32xf32, #tpu.memory_space<vmem>>, vector<16x32xf32>
    %cst_6 = arith.constant dense<0.000000e+00> : vector<16x32xf32>
    %7 = tpu.matmul %5, %6, %cst_6 {dimension_numbers = #tpu.dot_dimension_numbers<[1], [0], [0], [1], [0, 0, 1, 1], [], []>} : vector<16x16xf32>, vector<16x32xf32>, vector<16x32xf32> -> vector<16x32xf32>
    %c0_7 = arith.constant 0 : index
    %c0_8 = arith.constant 0 : index
    %8 = vector.load %arg4[%c0_7, %c0_8] : memref<1x32xf32, #tpu.memory_space<vmem>>, vector<1x32xf32>
    %9 = vector.broadcast %8 : vector<1x32xf32> to vector<16x32xf32>
    %10 = arith.addf %7, %9 : vector<16x32xf32>
    %c0_9 = arith.constant 0 : index
    %c0_10 = arith.constant 0 : index
    %11 = vector.load %arg5[%c0_9, %c0_10] : memref<1x32xf32, #tpu.memory_space<vmem>>, vector<1x32xf32>
    %12 = vector.broadcast %3 : vector<16x1xf32> to vector<16x32xf32>
    %13 = vector.broadcast %11 : vector<1x32xf32> to vector<16x32xf32>
    %14 = arith.mulf %12, %13 : vector<16x32xf32>
    %15 = arith.addf %10, %14 : vector<16x32xf32>
    %c0_11 = arith.constant 0 : index
    %c0_12 = arith.constant 0 : index
    %16 = vector.load %arg12[%c0_11, %c0_12] : memref<1x32xf32, #tpu.memory_space<vmem>>, vector<1x32xf32>
    %c0_13 = arith.constant 0 : index
    %c0_14 = arith.constant 0 : index
    %17 = vector.load %arg13[%c0_13, %c0_14] : memref<1x32xf32, #tpu.memory_space<vmem>>, vector<1x32xf32>
    %cst_15 = arith.constant 0.000000e+00 : f32
    %18 = vector.broadcast %cst_15 : f32 to vector<16x32xf32>
    %19 = arith.maximumf %15, %18 : vector<16x32xf32>
    %cst_16 = arith.constant dense<0.000000e+00> : vector<16xf32>
    %20 = vector.multi_reduction <add>, %19, %cst_16 [1] : vector<16x32xf32> to vector<16xf32>
    %21 = vector.shape_cast %20 : vector<16xf32> to vector<16x1xf32>
    %cst_17 = arith.constant 3.200000e+01 : f32
    %22 = vector.broadcast %cst_17 : f32 to vector<16x1xf32>
    %23 = arith.divf %21, %22 : vector<16x1xf32>
    %24 = vector.broadcast %23 : vector<16x1xf32> to vector<16x32xf32>
    %25 = arith.subf %19, %24 : vector<16x32xf32>
    %26 = arith.mulf %25, %25 : vector<16x32xf32>
    %cst_18 = arith.constant dense<0.000000e+00> : vector<16xf32>
    %27 = vector.multi_reduction <add>, %26, %cst_18 [1] : vector<16x32xf32> to vector<16xf32>
    %28 = vector.shape_cast %27 : vector<16xf32> to vector<16x1xf32>
    %cst_19 = arith.constant 3.200000e+01 : f32
    %29 = vector.broadcast %cst_19 : f32 to vector<16x1xf32>
    %30 = arith.divf %28, %29 : vector<16x1xf32>
    %31 = vector.broadcast %23 : vector<16x1xf32> to vector<16x32xf32>
    %32 = arith.subf %19, %31 : vector<16x32xf32>
    %cst_20 = arith.constant 9.99999974E-6 : f32
    %33 = vector.broadcast %cst_20 : f32 to vector<16x1xf32>
    %34 = arith.addf %30, %33 : vector<16x1xf32>
    %35 = math.rsqrt %34 : vector<16x1xf32>
    %36 = vector.broadcast %35 : vector<16x1xf32> to vector<16x32xf32>
    %37 = arith.mulf %32, %36 : vector<16x32xf32>
    %38 = vector.broadcast %16 : vector<1x32xf32> to vector<16x32xf32>
    %39 = arith.mulf %37, %38 : vector<16x32xf32>
    %40 = vector.broadcast %17 : vector<1x32xf32> to vector<16x32xf32>
    %41 = arith.addf %39, %40 : vector<16x32xf32>
    %c0_21 = arith.constant 0 : index
    %c0_22 = arith.constant 0 : index
    %42 = vector.load %arg6[%c0_21, %c0_22] : memref<32x64xf32, #tpu.memory_space<vmem>>, vector<32x64xf32>
    %cst_23 = arith.constant dense<0.000000e+00> : vector<16x64xf32>
    %43 = tpu.matmul %41, %42, %cst_23 {dimension_numbers = #tpu.dot_dimension_numbers<[1], [0], [0], [1], [0, 0, 1, 1], [], []>} : vector<16x32xf32>, vector<32x64xf32>, vector<16x64xf32> -> vector<16x64xf32>
    %44 = vector.extract_strided_slice %43 {offsets = [0, 0], sizes = [16, 32], strides = [1, 1]} : vector<16x64xf32> to vector<16x32xf32>
    %c0_24 = arith.constant 0 : index
    %c0_25 = arith.constant 0 : index
    %45 = vector.load %arg7[%c0_24, %c0_25] : memref<1x32xf32, #tpu.memory_space<vmem>>, vector<1x32xf32>
    %46 = vector.broadcast %45 : vector<1x32xf32> to vector<16x32xf32>
    %47 = arith.addf %44, %46 : vector<16x32xf32>
    %48 = vector.extract_strided_slice %43 {offsets = [0, 32], sizes = [16, 32], strides = [1, 1]} : vector<16x64xf32> to vector<16x32xf32>
    %c0_26 = arith.constant 0 : index
    %c0_27 = arith.constant 0 : index
    %49 = vector.load %arg8[%c0_26, %c0_27] : memref<1x32xf32, #tpu.memory_space<vmem>>, vector<1x32xf32>
    %50 = vector.broadcast %49 : vector<1x32xf32> to vector<16x32xf32>
    %51 = arith.addf %48, %50 : vector<16x32xf32>
    %cst_28 = arith.constant dense<0.000000e+00> : vector<16x32xf32>
    %52 = tpu.matmul %1, %51, %cst_28 {dimension_numbers = #tpu.dot_dimension_numbers<[1], [0], [0], [1], [0, 0, 1, 1], [], []>} : vector<16x16xf32>, vector<16x32xf32>, vector<16x32xf32> -> vector<16x32xf32>
    %53 = arith.addf %47, %52 : vector<16x32xf32>
    %c0_29 = arith.constant 0 : index
    %c0_30 = arith.constant 0 : index
    %54 = vector.load %arg14[%c0_29, %c0_30] : memref<1x32xf32, #tpu.memory_space<vmem>>, vector<1x32xf32>
    %c0_31 = arith.constant 0 : index
    %c0_32 = arith.constant 0 : index
    %55 = vector.load %arg15[%c0_31, %c0_32] : memref<1x32xf32, #tpu.memory_space<vmem>>, vector<1x32xf32>
    %cst_33 = arith.constant 0.000000e+00 : f32
    %56 = vector.broadcast %cst_33 : f32 to vector<16x32xf32>
    %57 = arith.maximumf %53, %56 : vector<16x32xf32>
    %cst_34 = arith.constant dense<0.000000e+00> : vector<16xf32>
    %58 = vector.multi_reduction <add>, %57, %cst_34 [1] : vector<16x32xf32> to vector<16xf32>
    %59 = vector.shape_cast %58 : vector<16xf32> to vector<16x1xf32>
    %cst_35 = arith.constant 3.200000e+01 : f32
    %60 = vector.broadcast %cst_35 : f32 to vector<16x1xf32>
    %61 = arith.divf %59, %60 : vector<16x1xf32>
    %62 = vector.broadcast %61 : vector<16x1xf32> to vector<16x32xf32>
    %63 = arith.subf %57, %62 : vector<16x32xf32>
    %64 = arith.mulf %63, %63 : vector<16x32xf32>
    %cst_36 = arith.constant dense<0.000000e+00> : vector<16xf32>
    %65 = vector.multi_reduction <add>, %64, %cst_36 [1] : vector<16x32xf32> to vector<16xf32>
    %66 = vector.shape_cast %65 : vector<16xf32> to vector<16x1xf32>
    %cst_37 = arith.constant 3.200000e+01 : f32
    %67 = vector.broadcast %cst_37 : f32 to vector<16x1xf32>
    %68 = arith.divf %66, %67 : vector<16x1xf32>
    %69 = vector.broadcast %61 : vector<16x1xf32> to vector<16x32xf32>
    %70 = arith.subf %57, %69 : vector<16x32xf32>
    %cst_38 = arith.constant 9.99999974E-6 : f32
    %71 = vector.broadcast %cst_38 : f32 to vector<16x1xf32>
    %72 = arith.addf %68, %71 : vector<16x1xf32>
    %73 = math.rsqrt %72 : vector<16x1xf32>
    %74 = vector.broadcast %73 : vector<16x1xf32> to vector<16x32xf32>
    %75 = arith.mulf %70, %74 : vector<16x32xf32>
    %76 = vector.broadcast %54 : vector<1x32xf32> to vector<16x32xf32>
    %77 = arith.mulf %75, %76 : vector<16x32xf32>
    %78 = vector.broadcast %55 : vector<1x32xf32> to vector<16x32xf32>
    %79 = arith.addf %77, %78 : vector<16x32xf32>
    %c0_39 = arith.constant 0 : index
    %c0_40 = arith.constant 0 : index
    %80 = vector.load %arg9[%c0_39, %c0_40] : memref<32x64xf32, #tpu.memory_space<vmem>>, vector<32x64xf32>
    %cst_41 = arith.constant dense<0.000000e+00> : vector<16x64xf32>
    %81 = tpu.matmul %79, %80, %cst_41 {dimension_numbers = #tpu.dot_dimension_numbers<[1], [0], [0], [1], [0, 0, 1, 1], [], []>} : vector<16x32xf32>, vector<32x64xf32>, vector<16x64xf32> -> vector<16x64xf32>
    %82 = vector.extract_strided_slice %81 {offsets = [0, 0], sizes = [16, 32], strides = [1, 1]} : vector<16x64xf32> to vector<16x32xf32>
    %c0_42 = arith.constant 0 : index
    %c0_43 = arith.constant 0 : index
    %83 = vector.load %arg10[%c0_42, %c0_43] : memref<1x32xf32, #tpu.memory_space<vmem>>, vector<1x32xf32>
    %84 = vector.broadcast %83 : vector<1x32xf32> to vector<16x32xf32>
    %85 = arith.addf %82, %84 : vector<16x32xf32>
    %86 = vector.extract_strided_slice %81 {offsets = [0, 32], sizes = [16, 32], strides = [1, 1]} : vector<16x64xf32> to vector<16x32xf32>
    %c0_44 = arith.constant 0 : index
    %c0_45 = arith.constant 0 : index
    %87 = vector.load %arg11[%c0_44, %c0_45] : memref<1x32xf32, #tpu.memory_space<vmem>>, vector<1x32xf32>
    %88 = vector.broadcast %87 : vector<1x32xf32> to vector<16x32xf32>
    %89 = arith.addf %86, %88 : vector<16x32xf32>
    %cst_46 = arith.constant dense<0.000000e+00> : vector<16x32xf32>
    %90 = tpu.matmul %1, %89, %cst_46 {dimension_numbers = #tpu.dot_dimension_numbers<[1], [0], [0], [1], [0, 0, 1, 1], [], []>} : vector<16x16xf32>, vector<16x32xf32>, vector<16x32xf32> -> vector<16x32xf32>
    %91 = arith.addf %85, %90 : vector<16x32xf32>
    %cst_47 = arith.constant 0.000000e+00 : f32
    %92 = vector.broadcast %cst_47 : f32 to vector<16x32xf32>
    %93 = arith.maximumf %91, %92 : vector<16x32xf32>
    %c0_48 = arith.constant 0 : index
    %c0_49 = arith.constant 0 : index
    %94 = vector.load %arg2[%c0_48, %c0_49] : memref<2x16xf32, #tpu.memory_space<vmem>>, vector<2x16xf32>
    %cst_50 = arith.constant dense<0.000000e+00> : vector<2x32xf32>
    %95 = tpu.matmul %94, %93, %cst_50 {dimension_numbers = #tpu.dot_dimension_numbers<[1], [0], [0], [1], [0, 0, 1, 1], [], []>} : vector<2x16xf32>, vector<16x32xf32>, vector<2x32xf32> -> vector<2x32xf32>
    %c0_51 = arith.constant 0 : index
    %c0_52 = arith.constant 0 : index
    %96 = vector.load %arg16[%c0_51, %c0_52] : memref<32x32xf32, #tpu.memory_space<vmem>>, vector<32x32xf32>
    %cst_53 = arith.constant dense<0.000000e+00> : vector<2x32xf32>
    %97 = tpu.matmul %95, %96, %cst_53 {dimension_numbers = #tpu.dot_dimension_numbers<[1], [0], [0], [1], [0, 0, 1, 1], [], []>} : vector<2x32xf32>, vector<32x32xf32>, vector<2x32xf32> -> vector<2x32xf32>
    %c0_54 = arith.constant 0 : index
    %c0_55 = arith.constant 0 : index
    %98 = vector.load %arg17[%c0_54, %c0_55] : memref<1x32xf32, #tpu.memory_space<vmem>>, vector<1x32xf32>
    %99 = vector.broadcast %98 : vector<1x32xf32> to vector<2x32xf32>
    %100 = arith.addf %97, %99 : vector<2x32xf32>
    %c0_56 = arith.constant 0 : index
    %c0_57 = arith.constant 0 : index
    %101 = vector.load %arg18[%c0_56, %c0_57] : memref<32x4xf32, #tpu.memory_space<vmem>>, vector<32x4xf32>
    %cst_58 = arith.constant dense<0.000000e+00> : vector<2x4xf32>
    %102 = tpu.matmul %100, %101, %cst_58 {dimension_numbers = #tpu.dot_dimension_numbers<[1], [0], [0], [1], [0, 0, 1, 1], [], []>} : vector<2x32xf32>, vector<32x4xf32>, vector<2x4xf32> -> vector<2x4xf32>
    %c0_59 = arith.constant 0 : index
    %c0_60 = arith.constant 0 : index
    %103 = vector.load %arg19[%c0_59, %c0_60] : memref<1x4xf32, #tpu.memory_space<vmem>>, vector<1x4xf32>
    %104 = vector.broadcast %103 : vector<1x4xf32> to vector<2x4xf32>
    %105 = arith.addf %102, %104 : vector<2x4xf32>
    %cst_61 = arith.constant dense<0xFF800000> : vector<2xf32>
    %106 = vector.multi_reduction <maximumf>, %105, %cst_61 [1] : vector<2x4xf32> to vector<2xf32>
    %107 = vector.shape_cast %106 : vector<2xf32> to vector<2x1xf32>
    %108 = vector.broadcast %107 : vector<2x1xf32> to vector<2x4xf32>
    %109 = arith.subf %105, %108 : vector<2x4xf32>
    %110 = math.exp %109 : vector<2x4xf32>
    %cst_62 = arith.constant dense<0.000000e+00> : vector<2xf32>
    %111 = vector.multi_reduction <add>, %110, %cst_62 [1] : vector<2x4xf32> to vector<2xf32>
    %112 = vector.shape_cast %111 : vector<2xf32> to vector<2x1xf32>
    %113 = math.log %112 : vector<2x1xf32>
    %114 = vector.broadcast %113 : vector<2x1xf32> to vector<2x4xf32>
    %115 = arith.subf %109, %114 : vector<2x4xf32>
    %c0_63 = arith.constant 0 : index
    %c0_64 = arith.constant 0 : index
    %116 = vector.load %arg20[%c0_63, %c0_64] : memref<2x4xf32, #tpu.memory_space<vmem>>, vector<2x4xf32>
    tpu.vector_store %arg20[%c0_63, %c0_64], %115 {strides = array<i32>} : memref<2x4xf32, #tpu.memory_space<vmem>>, vector<2x4xf32>,
    return
  }
}

</mosaic_0001>

<llo_original>
// kernel: gnn_stack_forward.1
$region0: #{gnn_stack_forward.1}
  #allocation0 [shape = 'u32[]', space=smem, size = 0x4, offset = 0x4, fixed_abs, tag = 'smem constant byte address 0x4 - core index']
  #allocation1 [shape = 'u32[144,128]{1,0:T(1,128)}', space=vmem, size = 0x12000, scoped, tag = 'internal scratch']
  %s0 = inlined_call_operand.vmem [shape: f32[16,8], index: 0, kind: input, shape index: {}]
  %s1 = inlined_call_operand.hbm [shape: f32[16,16], index: 1, kind: input, shape index: {}]
  %s2 = inlined_call_operand.vmem [shape: f32[2,16], index: 2, kind: input, shape index: {}]
  %s3 = inlined_call_operand.vmem [shape: f32[16,32], index: 3, kind: input, shape index: {}]
  %s4 = inlined_call_operand.vmem [shape: f32[1,32], index: 4, kind: input, shape index: {}]
  %s5 = inlined_call_operand.vmem [shape: f32[1,32], index: 5, kind: input, shape index: {}]
  %s6 = inlined_call_operand.vmem [shape: f32[32,64], index: 6, kind: input, shape index: {}]
  %s7 = inlined_call_operand.vmem [shape: f32[1,32], index: 7, kind: input, shape index: {}]
  %s8 = inlined_call_operand.vmem [shape: f32[1,32], index: 8, kind: input, shape index: {}]
  %s9 = inlined_call_operand.vmem [shape: f32[32,64], index: 9, kind: input, shape index: {}]
  %s10 = inlined_call_operand.vmem [shape: f32[1,32], index: 10, kind: input, shape index: {}]
  %s11 = inlined_call_operand.vmem [shape: f32[1,32], index: 11, kind: input, shape index: {}]
  %s12 = inlined_call_operand.vmem [shape: f32[1,32], index: 12, kind: input, shape index: {}]
  %s13 = inlined_call_operand.vmem [shape: f32[1,32], index: 13, kind: input, shape index: {}]
  %s14 = inlined_call_operand.vmem [shape: f32[1,32], index: 14, kind: input, shape index: {}]
  %s15 = inlined_call_operand.vmem [shape: f32[1,32], index: 15, kind: input, shape index: {}]
  %s16 = inlined_call_operand.vmem [shape: f32[32,32], index: 16, kind: input, shape index: {}]
  %s17 = inlined_call_operand.vmem [shape: f32[1,32], index: 17, kind: input, shape index: {}]
  %s18 = inlined_call_operand.vmem [shape: f32[32,4], index: 18, kind: input, shape index: {}]
  %s19 = inlined_call_operand.vmem [shape: f32[1,4], index: 19, kind: input, shape index: {}]
  %s20 = inlined_call_operand.hbm [shape: f32[2,4], index: 20, kind: output, shape index: {}]
  %s21 = sld [smem:[#allocation0]]
  $region94: #{gnn_stack_forward.1} parent=0
    _
  %s23 = ssub.s32 1, %s21
  %s24 = scalar_select 0, %s23, %s21
  $region1: #{gnn_stack_forward.1} parent=0
    #allocation2 [shape = 'u8[8192]{0}', space=vmem, size = 0x2000, scoped, tag = 'input window, operand 1, single buffered']
    #allocation3 [shape = 's32[1]{0}', space=sflag, size = 0x4, scoped, tag = 'scoped memory for gnn_stack_forward.1']
    #allocation4 [shape = 's32[1]{0}', space=sflag, size = 0x4, scoped, tag = 'scoped memory for gnn_stack_forward.1']
    #allocation5 [shape = 'u8[1024]{0}', space=vmem, size = 0x400, scoped, tag = 'output window, operand 0, single buffered']
    %25 = vsyncpa [#allocation3], 0
    %26 = vsyncpa [#allocation4], 0
    // Predicated region
    $region2: #{gnn_stack_forward.1} parent=1 // pred_check
      _
    $region3: #{gnn_stack_forward.1} parent=1 // pred_check_branch
      %28 = sbr.rel (0) target = $region5
    $region4: #{gnn_stack_forward.1} parent=1 // pred_region
      _
    $region5: #{gnn_stack_forward.1} parent=1 // pred_fallthru
      _
    // Predicated region
    $region6: #{gnn_stack_forward.1} parent=1 // pred_check
      _
    $region7: #{gnn_stack_forward.1} parent=1 // pred_check_branch
      %30 = sbr.rel (0) target = $region9
    $region8: #{gnn_stack_forward.1} parent=1 // pred_region
      %s32 = ssub.s32 256, 256
      %33 = vsyncadd [#allocation3], %s32
      %s34 = sshll.u32 [#allocation2], 4
      %s35 = int_to_ptr.vmem [resolvable:$true] %s34
      %40 = dma.hbm_to_vmem [thread:$0]  %s1, 256, %s35, [#allocation3], 128, 128, 8
    $region9: #{gnn_stack_forward.1} parent=1 // pred_fallthru
      _
    // Predicated region
    $region10: #{gnn_stack_forward.1} parent=1 // pred_check
      _
    $region11: #{gnn_stack_forward.1} parent=1 // pred_check_branch
      %42 = sbr.rel (0) target = $region13
    $region12: #{gnn_stack_forward.1} parent=1 // pred_region
      _
    $region13: #{gnn_stack_forward.1} parent=1 // pred_fallthru
      _
    // Predicated region
    $region14: #{gnn_stack_forward.1} parent=1 // pred_check
      _
    $region15: #{gnn_stack_forward.1} parent=1 // pred_check_branch
      %44 = sbr.rel (0) target = $region17
    $region16: #{gnn_stack_forward.1} parent=1 // pred_region
      _
    $region17: #{gnn_stack_forward.1} parent=1 // pred_fallthru
      _
    // Predicated region
    $region18: #{gnn_stack_forward.1} parent=1 // pred_check
      _
    $region19: #{gnn_stack_forward.1} parent=1 // pred_check_branch
      %46 = sbr.rel (0) target = $region21
    $region20: #{gnn_stack_forward.1} parent=1 // pred_region
      _
    $region21: #{gnn_stack_forward.1} parent=1 // pred_fallthru
      _
    // Predicated region
    $region22: #{gnn_stack_forward.1} parent=1 // pred_check
      _
    $region23: #{gnn_stack_forward.1} parent=1 // pred_check_branch
      %48 = sbr.rel (0) target = $region25
    $region24: #{gnn_stack_forward.1} parent=1 // pred_region
      _
    $region25: #{gnn_stack_forward.1} parent=1 // pred_fallthru
      _
    // Predicated region
    $region26: #{gnn_stack_forward.1} parent=1 // pred_check
      _
    $region27: #{gnn_stack_forward.1} parent=1 // pred_check_branch
      %50 = sbr.rel (0) target = $region29
    $region28: #{gnn_stack_forward.1} parent=1 // pred_region
      _
    $region29: #{gnn_stack_forward.1} parent=1 // pred_fallthru
      _
    // Predicated region
    $region30: #{gnn_stack_forward.1} parent=1 // pred_check
      _
    $region31: #{gnn_stack_forward.1} parent=1 // pred_check_branch
      %52 = sbr.rel (0) target = $region33
    $region32: #{gnn_stack_forward.1} parent=1 // pred_region
      _
    $region33: #{gnn_stack_forward.1} parent=1 // pred_fallthru
      _
    // Predicated region
    $region34: #{gnn_stack_forward.1} parent=1 // pred_check
      _
    $region35: #{gnn_stack_forward.1} parent=1 // pred_check_branch
      %54 = sbr.rel (0) target = $region37
    $region36: #{gnn_stack_forward.1} parent=1 // pred_region
      _
    $region37: #{gnn_stack_forward.1} parent=1 // pred_fallthru
      _
    // Predicated region
    $region38: #{gnn_stack_forward.1} parent=1 // pred_check
      _
    $region39: #{gnn_stack_forward.1} parent=1 // pred_check_branch
      %56 = sbr.rel (0) target = $region41
    $region40: #{gnn_stack_forward.1} parent=1 // pred_region
      _
    $region41: #{gnn_stack_forward.1} parent=1 // pred_fallthru
      _
    // Predicated region
    $region42: #{gnn_stack_forward.1} parent=1 // pred_check
      _
    $region43: #{gnn_stack_forward.1} parent=1 // pred_check_branch
      %58 = sbr.rel (0) target = $region45
    $region44: #{gnn_stack_forward.1} parent=1 // pred_region
      _
    $region45: #{gnn_stack_forward.1} parent=1 // pred_fallthru
      _
    // Predicated region
    $region46: #{gnn_stack_forward.1} parent=1 // pred_check
      _
    $region47: #{gnn_stack_forward.1} parent=1 // pred_check_branch
      %60 = sbr.rel (0) target = $region49
    $region48: #{gnn_stack_forward.1} parent=1 // pred_region
      _
    $region49: #{gnn_stack_forward.1} parent=1 // pred_fallthru
      _
    // Predicated region
    $region50: #{gnn_stack_forward.1} parent=1 // pred_check
      _
    $region51: #{gnn_stack_forward.1} parent=1 // pred_check_branch
      %62 = sbr.rel (0) target = $region53
    $region52: #{gnn_stack_forward.1} parent=1 // pred_region
      _
    $region53: #{gnn_stack_forward.1} parent=1 // pred_fallthru
      _
    // Predicated region
    $region54: #{gnn_stack_forward.1} parent=1 // pred_check
      _
    $region55: #{gnn_stack_forward.1} parent=1 // pred_check_branch
      %64 = sbr.rel (0) target = $region57
    $region56: #{gnn_stack_forward.1} parent=1 // pred_region
      _
    $region57: #{gnn_stack_forward.1} parent=1 // pred_fallthru
      _
    // Predicated region
    $region58: #{gnn_stack_forward.1} parent=1 // pred_check
      _
    $region59: #{gnn_stack_forward.1} parent=1 // pred_check_branch
      %66 = sbr.rel (0) target = $region61
    $region60: #{gnn_stack_forward.1} parent=1 // pred_region
      _
    $region61: #{gnn_stack_forward.1} parent=1 // pred_fallthru
      _
    // Predicated region
    $region62: #{gnn_stack_forward.1} parent=1 // pred_check
      _
    $region63: #{gnn_stack_forward.1} parent=1 // pred_check_branch
      %68 = sbr.rel (0) target = $region65
    $region64: #{gnn_stack_forward.1} parent=1 // pred_region
      _
    $region65: #{gnn_stack_forward.1} parent=1 // pred_fallthru
      _
    // Predicated region
    $region66: #{gnn_stack_forward.1} parent=1 // pred_check
      _
    $region67: #{gnn_stack_forward.1} parent=1 // pred_check_branch
      %70 = sbr.rel (0) target = $region69
    $region68: #{gnn_stack_forward.1} parent=1 // pred_region
      _
    $region69: #{gnn_stack_forward.1} parent=1 // pred_fallthru
      _
    // Predicated region
    $region70: #{gnn_stack_forward.1} parent=1 // pred_check
      _
    $region71: #{gnn_stack_forward.1} parent=1 // pred_check_branch
      %72 = sbr.rel (0) target = $region73
    $region72: #{gnn_stack_forward.1} parent=1 // pred_region
      _
    $region73: #{gnn_stack_forward.1} parent=1 // pred_fallthru
      _
    // Predicated region
    $region74: #{gnn_stack_forward.1} parent=1 // pred_check
      _
    $region75: #{gnn_stack_forward.1} parent=1 // pred_check_branch
      %74 = sbr.rel (0) target = $region77
    $region76: #{gnn_stack_forward.1} parent=1 // pred_region
      _
    $region77: #{gnn_stack_forward.1} parent=1 // pred_fallthru
      _
    // Predicated region
    $region78: #{gnn_stack_forward.1} parent=1 // pred_check
      _
    $region79: #{gnn_stack_forward.1} parent=1 // pred_check_branch
      %76 = sbr.rel (0) target = $region81
    $region80: #{gnn_stack_forward.1} parent=1 // pred_region
      _
    $region81: #{gnn_stack_forward.1} parent=1 // pred_fallthru
      _
    // Predicated region
    $region82: #{gnn_stack_forward.1} parent=1 // pred_check
      _
    $region83: #{gnn_stack_forward.1} parent=1 // pred_check_branch
      %78 = sbr.rel (0) target = $region85
    $region84: #{gnn_stack_forward.1} parent=1 // pred_region
      %79 = dma.done [#allocation3], 256
    $region85: #{gnn_stack_forward.1} parent=1 // pred_fallthru
      _
    %v80 = vld [vmem:[%s0] sm:$0xff]
    %v81 = vld [vmem:[%s0 + $0x8] sm:$0xff]
    %v82 = vld [vmem:[#allocation2] sm:$0xff]
    %v83 = vld [vmem:[#allocation2 + $0x8] sm:$0xff]
    %vm84 = vcmask 130048
    %v85 = vsel %vm84, %v82, 0.0
    %86 = vadd.xlane.f32.xlu0 %v85
    %v87 = vpop.xlane.xlu0 %86
    %v88 = vsel %vm84, %v83, 0.0
    %89 = vadd.xlane.f32.xlu0 %v88
    %v90 = vpop.xlane.xlu0 %89
    %v92 = vsel %vm84, %v82, 0
    %v95 = vsel %vm84, %v83, 0
    %97 = vmatprep.subr.mxu0 0.0
    %98 = vmatpush1.msra.mxu0 0.0
    %99 = vmatprep.subr.mxu0 0.0
    %100 = vmatpush1.msra.mxu0 0.0
    %101 = vmatprep.subr.mxu0 0.0
    %102 = vmatpush1.msra.mxu0 0.0
    %103 = vmatprep.subr.mxu0 0.0
    %104 = vmatpush1.msra.mxu0 0.0
    %105 = vmatprep.subr.mxu0 0.0
    %106 = vmatpush1.msra.mxu0 0.0
    %107 = vmatprep.subr.mxu0 0.0
    %108 = vmatpush1.msra.mxu0 0.0
    %109 = vmatprep.subr.mxu0 0.0
    %110 = vmatpush1.msra.mxu0 0.0
    %111 = vmatprep.subr.mxu0 0.0
    %112 = vmatpush1.msra.mxu0 0.0
    %113 = vmatprep.subr.mxu0 0.0
    %114 = vmatpush1.msra.mxu0 0.0
    %115 = vmatprep.subr.mxu0 0.0
    %116 = vmatpush1.msra.mxu0 0.0
    %117 = vmatprep.subr.mxu0 0.0
    %118 = vmatpush1.msra.mxu0 0.0
    %119 = vmatprep.subr.mxu0 0.0
    %120 = vmatpush1.msra.mxu0 0.0
    %121 = vmatprep.subr.mxu0 0.0
    %122 = vmatpush1.msra.mxu0 0.0
    %123 = vmatprep.subr.mxu0 0.0
    %124 = vmatpush1.msra.mxu0 0.0
    %125 = vmatprep.subr.mxu0 0.0
    %126 = vmatpush1.msra.mxu0 %v81
    %127 = vmatprep.subr.mxu0 0.0
    %128 = vmatpush1.msra.mxu0 %v80
    %129 = vmatprep.subr.mxu0 0.0
    %130 = vmatpush2.msra.mxu0 0.0
    %131 = vmatprep.subr.mxu0 0.0
    %132 = vmatpush2.msra.mxu0 0.0
    %133 = vmatprep.subr.mxu0 0.0
    %134 = vmatpush2.msra.mxu0 0.0
    %135 = vmatprep.subr.mxu0 0.0
    %136 = vmatpush2.msra.mxu0 0.0
    %137 = vmatprep.subr.mxu0 0.0
    %138 = vmatpush2.msra.mxu0 0.0
    %139 = vmatprep.subr.mxu0 0.0
    %140 = vmatpush2.msra.mxu0 0.0
    %141 = vmatprep.subr.mxu0 0.0
    %142 = vmatpush2.msra.mxu0 0.0
    %143 = vmatprep.subr.mxu0 0.0
    %144 = vmatpush2.msra.mxu0 0.0
    %145 = vmatprep.subr.mxu0 0.0
    %146 = vmatpush2.msra.mxu0 0.0
    %147 = vmatprep.subr.mxu0 0.0
    %148 = vmatpush2.msra.mxu0 0.0
    %149 = vmatprep.subr.mxu0 0.0
    %150 = vmatpush2.msra.mxu0 0.0
    %151 = vmatprep.subr.mxu0 0.0
    %152 = vmatpush2.msra.mxu0 0.0
    %153 = vmatprep.subr.mxu0 0.0
    %154 = vmatpush2.msra.mxu0 0.0
    %155 = vmatprep.subr.mxu0 0.0
    %156 = vmatpush2.msra.mxu0 0.0
    %157 = vmatprep.subr.mxu0 0.0
    %158 = vmatpush2.msra.mxu0 0.0
    %159 = vmatprep.subr.mxu0 0.0
    %160 = vmatpush2.msra.mxu0 0.0
    %161 = vmatprep.mubr.f32.mxu0 0.0
    %162 = vmatmul.mubr.f32.gmra.mxu0 %v92
    %v163 = vpop.f32.mrf.mxu0
    %v164 = vadd.f32 0.0, %v163
    %v165 = vpop.f32.mrf.mxu0
    %166 = vmatprep.mubr.f32.mxu0 0.0
    %167 = vmatmul.mubr.f32.gmra.mxu0 %v95
    %v168 = vpop.f32.mrf.mxu0
    %v169 = vadd.f32 0.0, %v168
    %v170 = vpop.f32.mrf.mxu0
    %171 = vdwg.mxu0
    %174 = vrot.lane.b32.xlu0 %v164, 8
    %v175 = vpop.permute.xlu0 %174
    %176 = vrot.lane.b32.xlu0 %v169, 8
    %v177 = vpop.permute.xlu0 %176
    %vm180 = vcmask 64512
    %v181 = vsel %vm180, %v80, %v175
    %v182 = vsel %vm180, %v81, %v177
    %v183 = vld [vmem:[%s3] sm:$0xff]
    %v184 = vld [vmem:[%s3 + $0x8] sm:$0xff]
    %v185 = vld [vmem:[%s4] sm:$0x1]
    %v187 = vlaneseq
    %v188 = vshrl.u32 %v187, 7
    %v189 = vsub.s32 0, %v188
    %v190 = vrot.slane %v185, %v189
    %v193 = vsel %vm84, %v181, 0
    %v196 = vsel %vm84, %v182, 0
    %198 = vmatprep.subr.mxu0 0.0
    %199 = vmatpush1.msra.mxu0 0.0
    %200 = vmatprep.subr.mxu0 0.0
    %201 = vmatpush1.msra.mxu0 0.0
    %202 = vmatprep.subr.mxu0 0.0
    %203 = vmatpush1.msra.mxu0 0.0
    %204 = vmatprep.subr.mxu0 0.0
    %205 = vmatpush1.msra.mxu0 0.0
    %206 = vmatprep.subr.mxu0 0.0
    %207 = vmatpush1.msra.mxu0 0.0
    %208 = vmatprep.subr.mxu0 0.0
    %209 = vmatpush1.msra.mxu0 0.0
    %210 = vmatprep.subr.mxu0 0.0
    %211 = vmatpush1.msra.mxu0 0.0
    %212 = vmatprep.subr.mxu0 0.0
    %213 = vmatpush1.msra.mxu0 0.0
    %214 = vmatprep.subr.mxu0 0.0
    %215 = vmatpush1.msra.mxu0 0.0
    %216 = vmatprep.subr.mxu0 0.0
    %217 = vmatpush1.msra.mxu0 0.0
    %218 = vmatprep.subr.mxu0 0.0
    %219 = vmatpush1.msra.mxu0 0.0
    %220 = vmatprep.subr.mxu0 0.0
    %221 = vmatpush1.msra.mxu0 0.0
    %222 = vmatprep.subr.mxu0 0.0
    %223 = vmatpush1.msra.mxu0 0.0
    %224 = vmatprep.subr.mxu0 0.0
    %225 = vmatpush1.msra.mxu0 0.0
    %226 = vmatprep.subr.mxu0 0.0
    %227 = vmatpush1.msra.mxu0 %v184
    %228 = vmatprep.subr.mxu0 0.0
    %229 = vmatpush1.msra.mxu0 %v183
    %230 = vmatprep.subr.mxu0 0.0
    %231 = vmatpush2.msra.mxu0 0.0
    %232 = vmatprep.subr.mxu0 0.0
    %233 = vmatpush2.msra.mxu0 0.0
    %234 = vmatprep.subr.mxu0 0.0
    %235 = vmatpush2.msra.mxu0 0.0
    %236 = vmatprep.subr.mxu0 0.0
    %237 = vmatpush2.msra.mxu0 0.0
    %238 = vmatprep.subr.mxu0 0.0
    %239 = vmatpush2.msra.mxu0 0.0
    %240 = vmatprep.subr.mxu0 0.0
    %241 = vmatpush2.msra.mxu0 0.0
    %242 = vmatprep.subr.mxu0 0.0
    %243 = vmatpush2.msra.mxu0 0.0
    %244 = vmatprep.subr.mxu0 0.0
    %245 = vmatpush2.msra.mxu0 0.0
    %246 = vmatprep.subr.mxu0 0.0
    %247 = vmatpush2.msra.mxu0 0.0
    %248 = vmatprep.subr.mxu0 0.0
    %249 = vmatpush2.msra.mxu0 0.0
    %250 = vmatprep.subr.mxu0 0.0
    %251 = vmatpush2.msra.mxu0 0.0
    %252 = vmatprep.subr.mxu0 0.0
    %253 = vmatpush2.msra.mxu0 0.0
    %254 = vmatprep.subr.mxu0 0.0
    %255 = vmatpush2.msra.mxu0 0.0
    %256 = vmatprep.subr.mxu0 0.0
    %257 = vmatpush2.msra.mxu0 0.0
    %258 = vmatprep.subr.mxu0 0.0
    %259 = vmatpush2.msra.mxu0 0.0
    %260 = vmatprep.subr.mxu0 0.0
    %261 = vmatpush2.msra.mxu0 0.0
    %262 = vmatprep.mubr.f32.mxu0 0.0
    %263 = vmatmul.mubr.f32.gmra.mxu0 %v193
    %v264 = vpop.f32.mrf.mxu0
    %v265 = vadd.f32 %v190, %v264
    %v266 = vpop.f32.mrf.mxu0
    %267 = vmatprep.mubr.f32.mxu0 0.0
    %268 = vmatmul.mubr.f32.gmra.mxu0 %v196
    %v269 = vpop.f32.mrf.mxu0
    %v270 = vadd.f32 %v190, %v269
    %v271 = vpop.f32.mrf.mxu0
    %272 = vdwg.mxu0
    %v273 = vld [vmem:[%s5] sm:$0x1]
    %v275 = vlaneseq
    %v276 = vshrl.u32 %v275, 7
    %v277 = vsub.s32 0, %v276
    %v278 = vrot.slane %v273, %v277
    %v280 = vmul.f32 %v87, %v278
    %v281 = vmul.f32 %v90, %v278
    %v282 = vadd.f32 %v265, %v280
    %v283 = vadd.f32 %v270, %v281
    %v284 = vld [vmem:[%s12] sm:$0x1]
    %v285 = vld [vmem:[%s13] sm:$0x1]
    %v286 = vmax.f32 %v282, 0.0
    %v287 = vmax.f32 %v283, 0.0
    %vm288 = vcmask 261120
    %v289 = vsel %vm288, %v286, 0.0
    %290 = vadd.xlane.f32.xlu0 %v289
    %v291 = vpop.xlane.xlu0 %290
    %v292 = vsel %vm288, %v287, 0.0
    %293 = vadd.xlane.f32.xlu0 %v292
    %v294 = vpop.xlane.xlu0 %293
    %v295 = vrcp.pop 32.0
    %v296 = vmul.f32 %v291, %v295
    %v297 = vmul.f32 %v294, %v295
    %v298 = vsub.f32 %v286, %v296
    %v299 = vsub.f32 %v287, %v297
    %v300 = vmul.f32 %v298, %v298
    %v301 = vmul.f32 %v299, %v299
    %v302 = vsel %vm288, %v300, 0.0
    %303 = vadd.xlane.f32.xlu0 %v302
    %v304 = vpop.xlane.xlu0 %303
    %v305 = vsel %vm288, %v301, 0.0
    %306 = vadd.xlane.f32.xlu0 %v305
    %v307 = vpop.xlane.xlu0 %306
    %v308 = vmul.f32 %v304, %v295
    %v309 = vmul.f32 %v307, %v295
    %v310 = vadd.f32 %v308, 1e-05
    %v311 = vadd.f32 %v309, 1e-05
    %v312 = vrsqrt.pop %v310
    %v313 = vrsqrt.pop %v311
    %v314 = vmul.f32 %v298, %v312
    %v315 = vmul.f32 %v299, %v313
    %v317 = vlaneseq
    %v318 = vshrl.u32 %v317, 7
    %v319 = vsub.s32 0, %v318
    %v320 = vrot.slane %v284, %v319
    %v322 = vmul.f32 %v314, %v320
    %v323 = vmul.f32 %v315, %v320
    %v325 = vlaneseq
    %v326 = vshrl.u32 %v325, 7
    %v327 = vsub.s32 0, %v326
    %v328 = vrot.slane %v285, %v327
    %v330 = vadd.f32 %v322, %v328
    %v331 = vadd.f32 %v323, %v328
    %v332 = vld [vmem:[%s6] sm:$0xff]
    %v333 = vld [vmem:[%s6 + $0x8] sm:$0xff]
    %v334 = vld [vmem:[%s6 + $0x10] sm:$0xff]
    %v335 = vld [vmem:[%s6 + $0x18] sm:$0xff]
    %v337 = vsel %vm288, %v330, 0
    %v340 = vsel %vm288, %v331, 0
    %342 = vmatprep.subr.mxu0 0.0
    %343 = vmatpush1.msra.mxu0 0.0
    %344 = vmatprep.subr.mxu0 0.0
    %345 = vmatpush1.msra.mxu0 0.0
    %346 = vmatprep.subr.mxu0 0.0
    %347 = vmatpush1.msra.mxu0 0.0
    %348 = vmatprep.subr.mxu0 0.0
    %349 = vmatpush1.msra.mxu0 0.0
    %350 = vmatprep.subr.mxu0 0.0
    %351 = vmatpush1.msra.mxu0 0.0
    %352 = vmatprep.subr.mxu0 0.0
    %353 = vmatpush1.msra.mxu0 0.0
    %354 = vmatprep.subr.mxu0 0.0
    %355 = vmatpush1.msra.mxu0 0.0
    %356 = vmatprep.subr.mxu0 0.0
    %357 = vmatpush1.msra.mxu0 0.0
    %358 = vmatprep.subr.mxu0 0.0
    %359 = vmatpush1.msra.mxu0 0.0
    %360 = vmatprep.subr.mxu0 0.0
    %361 = vmatpush1.msra.mxu0 0.0
    %362 = vmatprep.subr.mxu0 0.0
    %363 = vmatpush1.msra.mxu0 0.0
    %364 = vmatprep.subr.mxu0 0.0
    %365 = vmatpush1.msra.mxu0 0.0
    %366 = vmatprep.subr.mxu0 0.0
    %367 = vmatpush1.msra.mxu0 %v335
    %368 = vmatprep.subr.mxu0 0.0
    %369 = vmatpush1.msra.mxu0 %v334
    %370 = vmatprep.subr.mxu0 0.0
    %371 = vmatpush1.msra.mxu0 %v333
    %372 = vmatprep.subr.mxu0 0.0
    %373 = vmatpush1.msra.mxu0 %v332
    %374 = vmatprep.subr.mxu0 0.0
    %375 = vmatpush2.msra.mxu0 0.0
    %376 = vmatprep.subr.mxu0 0.0
    %377 = vmatpush2.msra.mxu0 0.0
    %378 = vmatprep.subr.mxu0 0.0
    %379 = vmatpush2.msra.mxu0 0.0
    %380 = vmatprep.subr.mxu0 0.0
    %381 = vmatpush2.msra.mxu0 0.0
    %382 = vmatprep.subr.mxu0 0.0
    %383 = vmatpush2.msra.mxu0 0.0
    %384 = vmatprep.subr.mxu0 0.0
    %385 = vmatpush2.msra.mxu0 0.0
    %386 = vmatprep.subr.mxu0 0.0
    %387 = vmatpush2.msra.mxu0 0.0
    %388 = vmatprep.subr.mxu0 0.0
    %389 = vmatpush2.msra.mxu0 0.0
    %390 = vmatprep.subr.mxu0 0.0
    %391 = vmatpush2.msra.mxu0 0.0
    %392 = vmatprep.subr.mxu0 0.0
    %393 = vmatpush2.msra.mxu0 0.0
    %394 = vmatprep.subr.mxu0 0.0
    %395 = vmatpush2.msra.mxu0 0.0
    %396 = vmatprep.subr.mxu0 0.0
    %397 = vmatpush2.msra.mxu0 0.0
    %398 = vmatprep.subr.mxu0 0.0
    %399 = vmatpush2.msra.mxu0 0.0
    %400 = vmatprep.subr.mxu0 0.0
    %401 = vmatpush2.msra.mxu0 0.0
    %402 = vmatprep.subr.mxu0 0.0
    %403 = vmatpush2.msra.mxu0 0.0
    %404 = vmatprep.subr.mxu0 0.0
    %405 = vmatpush2.msra.mxu0 0.0
    %406 = vmatprep.mubr.f32.mxu0 0.0
    %407 = vmatmul.mubr.f32.gmra.mxu0 %v337
    %v408 = vpop.f32.mrf.mxu0
    %v409 = vadd.f32 0.0, %v408
    %v410 = vpop.f32.mrf.mxu0
    %411 = vmatprep.mubr.f32.mxu0 0.0
    %412 = vmatmul.mubr.f32.gmra.mxu0 %v340
    %v413 = vpop.f32.mrf.mxu0
    %v414 = vadd.f32 0.0, %v413
    %v415 = vpop.f32.mrf.mxu0
    %416 = vdwg.mxu0
    %v417 = vld [vmem:[%s7] sm:$0x1]
    %v419 = vlaneseq
    %v420 = vshrl.u32 %v419, 7
    %v421 = vsub.s32 0, %v420
    %v422 = vrot.slane %v417, %v421
    %v424 = vadd.f32 %v409, %v422
    %v425 = vadd.f32 %v414, %v422
    %v426 = vld [vmem:[%s8] sm:$0x1]
    %v428 = vlaneseq
    %v429 = vshrl.u32 %v428, 7
    %v430 = vsub.s32 0, %v429
    %v431 = vrot.slane %v426, %v430
    %432 = vrot.lane.b32.xlu0 %v431, 32
    %v433 = vpop.permute.xlu0 %432
    %v435 = vadd.f32 %v409, %v433
    %v436 = vadd.f32 %v414, %v433
    %439 = vrot.lane.b32.xlu0 %v435, 96
    %v440 = vpop.permute.xlu0 %439
    %441 = vrot.lane.b32.xlu0 %v436, 96
    %v442 = vpop.permute.xlu0 %441
    %445 = vmatprep.subr.mxu0 0.0
    %446 = vmatpush1.msra.mxu0 0.0
    %447 = vmatprep.subr.mxu0 0.0
    %448 = vmatpush1.msra.mxu0 0.0
    %449 = vmatprep.subr.mxu0 0.0
    %450 = vmatpush1.msra.mxu0 0.0
    %451 = vmatprep.subr.mxu0 0.0
    %452 = vmatpush1.msra.mxu0 0.0
    %453 = vmatprep.subr.mxu0 0.0
    %454 = vmatpush1.msra.mxu0 0.0
    %455 = vmatprep.subr.mxu0 0.0
    %456 = vmatpush1.msra.mxu0 0.0
    %457 = vmatprep.subr.mxu0 0.0
    %458 = vmatpush1.msra.mxu0 0.0
    %459 = vmatprep.subr.mxu0 0.0
    %460 = vmatpush1.msra.mxu0 0.0
    %461 = vmatprep.subr.mxu0 0.0
    %462 = vmatpush1.msra.mxu0 0.0
    %463 = vmatprep.subr.mxu0 0.0
    %464 = vmatpush1.msra.mxu0 0.0
    %465 = vmatprep.subr.mxu0 0.0
    %466 = vmatpush1.msra.mxu0 0.0
    %467 = vmatprep.subr.mxu0 0.0
    %468 = vmatpush1.msra.mxu0 0.0
    %469 = vmatprep.subr.mxu0 0.0
    %470 = vmatpush1.msra.mxu0 0.0
    %471 = vmatprep.subr.mxu0 0.0
    %472 = vmatpush1.msra.mxu0 0.0
    %473 = vmatprep.subr.mxu0 0.0
    %474 = vmatpush1.msra.mxu0 %v442
    %475 = vmatprep.subr.mxu0 0.0
    %476 = vmatpush1.msra.mxu0 %v440
    %477 = vmatprep.subr.mxu0 0.0
    %478 = vmatpush2.msra.mxu0 0.0
    %479 = vmatprep.subr.mxu0 0.0
    %480 = vmatpush2.msra.mxu0 0.0
    %481 = vmatprep.subr.mxu0 0.0
    %482 = vmatpush2.msra.mxu0 0.0
    %483 = vmatprep.subr.mxu0 0.0
    %484 = vmatpush2.msra.mxu0 0.0
    %485 = vmatprep.subr.mxu0 0.0
    %486 = vmatpush2.msra.mxu0 0.0
    %487 = vmatprep.subr.mxu0 0.0
    %488 = vmatpush2.msra.mxu0 0.0
    %489 = vmatprep.subr.mxu0 0.0
    %490 = vmatpush2.msra.mxu0 0.0
    %491 = vmatprep.subr.mxu0 0.0
    %492 = vmatpush2.msra.mxu0 0.0
    %493 = vmatprep.subr.mxu0 0.0
    %494 = vmatpush2.msra.mxu0 0.0
    %495 = vmatprep.subr.mxu0 0.0
    %496 = vmatpush2.msra.mxu0 0.0
    %497 = vmatprep.subr.mxu0 0.0
    %498 = vmatpush2.msra.mxu0 0.0
    %499 = vmatprep.subr.mxu0 0.0
    %500 = vmatpush2.msra.mxu0 0.0
    %501 = vmatprep.subr.mxu0 0.0
    %502 = vmatpush2.msra.mxu0 0.0
    %503 = vmatprep.subr.mxu0 0.0
    %504 = vmatpush2.msra.mxu0 0.0
    %505 = vmatprep.subr.mxu0 0.0
    %506 = vmatpush2.msra.mxu0 0.0
    %507 = vmatprep.subr.mxu0 0.0
    %508 = vmatpush2.msra.mxu0 0.0
    %509 = vmatprep.mubr.f32.mxu0 0.0
    %510 = vmatmul.mubr.f32.gmra.mxu0 %v92
    %v511 = vpop.f32.mrf.mxu0
    %v512 = vadd.f32 0.0, %v511
    %v513 = vpop.f32.mrf.mxu0
    %514 = vmatprep.mubr.f32.mxu0 0.0
    %515 = vmatmul.mubr.f32.gmra.mxu0 %v95
    %v516 = vpop.f32.mrf.mxu0
    %v517 = vadd.f32 0.0, %v516
    %v518 = vpop.f32.mrf.mxu0
    %519 = vdwg.mxu0
    %v520 = vadd.f32 %v424, %v512
    %v521 = vadd.f32 %v425, %v517
    %v522 = vld [vmem:[%s14] sm:$0x1]
    %v523 = vld [vmem:[%s15] sm:$0x1]
    %v524 = vmax.f32 %v520, 0.0
    %v525 = vmax.f32 %v521, 0.0
    %v526 = vsel %vm288, %v524, 0.0
    %527 = vadd.xlane.f32.xlu0 %v526
    %v528 = vpop.xlane.xlu0 %527
    %v529 = vsel %vm288, %v525, 0.0
    %530 = vadd.xlane.f32.xlu0 %v529
    %v531 = vpop.xlane.xlu0 %530
    %v532 = vmul.f32 %v528, %v295
    %v533 = vmul.f32 %v531, %v295
    %v534 = vsub.f32 %v524, %v532
    %v535 = vsub.f32 %v525, %v533
    %v536 = vmul.f32 %v534, %v534
    %v537 = vmul.f32 %v535, %v535
    %v538 = vsel %vm288, %v536, 0.0
    %539 = vadd.xlane.f32.xlu0 %v538
    %v540 = vpop.xlane.xlu0 %539
    %v541 = vsel %vm288, %v537, 0.0
    %542 = vadd.xlane.f32.xlu0 %v541
    %v543 = vpop.xlane.xlu0 %542
    %v544 = vmul.f32 %v540, %v295
    %v545 = vmul.f32 %v543, %v295
    %v546 = vadd.f32 %v544, 1e-05
    %v547 = vadd.f32 %v545, 1e-05
    %v548 = vrsqrt.pop %v546
    %v549 = vrsqrt.pop %v547
    %v550 = vmul.f32 %v534, %v548
    %v551 = vmul.f32 %v535, %v549
    %v553 = vlaneseq
    %v554 = vshrl.u32 %v553, 7
    %v555 = vsub.s32 0, %v554
    %v556 = vrot.slane %v522, %v555
    %v558 = vmul.f32 %v550, %v556
    %v559 = vmul.f32 %v551, %v556
    %v561 = vlaneseq
    %v562 = vshrl.u32 %v561, 7
    %v563 = vsub.s32 0, %v562
    %v564 = vrot.slane %v523, %v563
    %v566 = vadd.f32 %v558, %v564
    %v567 = vadd.f32 %v559, %v564
    %v568 = vld [vmem:[%s9] sm:$0xff]
    %v569 = vld [vmem:[%s9 + $0x8] sm:$0xff]
    %v570 = vld [vmem:[%s9 + $0x10] sm:$0xff]
    %v571 = vld [vmem:[%s9 + $0x18] sm:$0xff]
    %v573 = vsel %vm288, %v566, 0
    %v576 = vsel %vm288, %v567, 0
    %578 = vmatprep.subr.mxu0 0.0
    %579 = vmatpush1.msra.mxu0 0.0
    %580 = vmatprep.subr.mxu0 0.0
    %581 = vmatpush1.msra.mxu0 0.0
    %582 = vmatprep.subr.mxu0 0.0
    %583 = vmatpush1.msra.mxu0 0.0
    %584 = vmatprep.subr.mxu0 0.0
    %585 = vmatpush1.msra.mxu0 0.0
    %586 = vmatprep.subr.mxu0 0.0
    %587 = vmatpush1.msra.mxu0 0.0
    %588 = vmatprep.subr.mxu0 0.0
    %589 = vmatpush1.msra.mxu0 0.0
    %590 = vmatprep.subr.mxu0 0.0
    %591 = vmatpush1.msra.mxu0 0.0
    %592 = vmatprep.subr.mxu0 0.0
    %593 = vmatpush1.msra.mxu0 0.0
    %594 = vmatprep.subr.mxu0 0.0
    %595 = vmatpush1.msra.mxu0 0.0
    %596 = vmatprep.subr.mxu0 0.0
    %597 = vmatpush1.msra.mxu0 0.0
    %598 = vmatprep.subr.mxu0 0.0
    %599 = vmatpush1.msra.mxu0 0.0
    %600 = vmatprep.subr.mxu0 0.0
    %601 = vmatpush1.msra.mxu0 0.0
    %602 = vmatprep.subr.mxu0 0.0
    %603 = vmatpush1.msra.mxu0 %v571
    %604 = vmatprep.subr.mxu0 0.0
    %605 = vmatpush1.msra.mxu0 %v570
    %606 = vmatprep.subr.mxu0 0.0
    %607 = vmatpush1.msra.mxu0 %v569
    %608 = vmatprep.subr.mxu0 0.0
    %609 = vmatpush1.msra.mxu0 %v568
    %610 = vmatprep.subr.mxu0 0.0
    %611 = vmatpush2.msra.mxu0 0.0
    %612 = vmatprep.subr.mxu0 0.0
    %613 = vmatpush2.msra.mxu0 0.0
    %614 = vmatprep.subr.mxu0 0.0
    %615 = vmatpush2.msra.mxu0 0.0
    %616 = vmatprep.subr.mxu0 0.0
    %617 = vmatpush2.msra.mxu0 0.0
    %618 = vmatprep.subr.mxu0 0.0
    %619 = vmatpush2.msra.mxu0 0.0
    %620 = vmatprep.subr.mxu0 0.0
    %621 = vmatpush2.msra.mxu0 0.0
    %622 = vmatprep.subr.mxu0 0.0
    %623 = vmatpush2.msra.mxu0 0.0
    %624 = vmatprep.subr.mxu0 0.0
    %625 = vmatpush2.msra.mxu0 0.0
    %626 = vmatprep.subr.mxu0 0.0
    %627 = vmatpush2.msra.mxu0 0.0
    %628 = vmatprep.subr.mxu0 0.0
    %629 = vmatpush2.msra.mxu0 0.0
    %630 = vmatprep.subr.mxu0 0.0
    %631 = vmatpush2.msra.mxu0 0.0
    %632 = vmatprep.subr.mxu0 0.0
    %633 = vmatpush2.msra.mxu0 0.0
    %634 = vmatprep.subr.mxu0 0.0
    %635 = vmatpush2.msra.mxu0 0.0
    %636 = vmatprep.subr.mxu0 0.0
    %637 = vmatpush2.msra.mxu0 0.0
    %638 = vmatprep.subr.mxu0 0.0
    %639 = vmatpush2.msra.mxu0 0.0
    %640 = vmatprep.subr.mxu0 0.0
    %641 = vmatpush2.msra.mxu0 0.0
    %642 = vmatprep.mubr.f32.mxu0 0.0
    %643 = vmatmul.mubr.f32.gmra.mxu0 %v573
    %v644 = vpop.f32.mrf.mxu0
    %v645 = vadd.f32 0.0, %v644
    %v646 = vpop.f32.mrf.mxu0
    %647 = vmatprep.mubr.f32.mxu0 0.0
    %648 = vmatmul.mubr.f32.gmra.mxu0 %v576
    %v649 = vpop.f32.mrf.mxu0
    %v650 = vadd.f32 0.0, %v649
    %v651 = vpop.f32.mrf.mxu0
    %652 = vdwg.mxu0
    %v653 = vld [vmem:[%s10] sm:$0x1]
    %v655 = vlaneseq
    %v656 = vshrl.u32 %v655, 7
    %v657 = vsub.s32 0, %v656
    %v658 = vrot.slane %v653, %v657
    %v660 = vadd.f32 %v645, %v658
    %v661 = vadd.f32 %v650, %v658
    %v662 = vld [vmem:[%s11] sm:$0x1]
    %v664 = vlaneseq
    %v665 = vshrl.u32 %v664, 7
    %v666 = vsub.s32 0, %v665
    %v667 = vrot.slane %v662, %v666
    %668 = vrot.lane.b32.xlu0 %v667, 32
    %v669 = vpop.permute.xlu0 %668
    %v671 = vadd.f32 %v645, %v669
    %v672 = vadd.f32 %v650, %v669
    %675 = vrot.lane.b32.xlu0 %v671, 96
    %v676 = vpop.permute.xlu0 %675
    %677 = vrot.lane.b32.xlu0 %v672, 96
    %v678 = vpop.permute.xlu0 %677
    %681 = vmatprep.subr.mxu0 0.0
    %682 = vmatpush1.msra.mxu0 0.0
    %683 = vmatprep.subr.mxu0 0.0
    %684 = vmatpush1.msra.mxu0 0.0
    %685 = vmatprep.subr.mxu0 0.0
    %686 = vmatpush1.msra.mxu0 0.0
    %687 = vmatprep.subr.mxu0 0.0
    %688 = vmatpush1.msra.mxu0 0.0
    %689 = vmatprep.subr.mxu0 0.0
    %690 = vmatpush1.msra.mxu0 0.0
    %691 = vmatprep.subr.mxu0 0.0
    %692 = vmatpush1.msra.mxu0 0.0
    %693 = vmatprep.subr.mxu0 0.0
    %694 = vmatpush1.msra.mxu0 0.0
    %695 = vmatprep.subr.mxu0 0.0
    %696 = vmatpush1.msra.mxu0 0.0
    %697 = vmatprep.subr.mxu0 0.0
    %698 = vmatpush1.msra.mxu0 0.0
    %699 = vmatprep.subr.mxu0 0.0
    %700 = vmatpush1.msra.mxu0 0.0
    %701 = vmatprep.subr.mxu0 0.0
    %702 = vmatpush1.msra.mxu0 0.0
    %703 = vmatprep.subr.mxu0 0.0
    %704 = vmatpush1.msra.mxu0 0.0
    %705 = vmatprep.subr.mxu0 0.0
    %706 = vmatpush1.msra.mxu0 0.0
    %707 = vmatprep.subr.mxu0 0.0
    %708 = vmatpush1.msra.mxu0 0.0
    %709 = vmatprep.subr.mxu0 0.0
    %710 = vmatpush1.msra.mxu0 %v678
    %711 = vmatprep.subr.mxu0 0.0
    %712 = vmatpush1.msra.mxu0 %v676
    %713 = vmatprep.subr.mxu0 0.0
    %714 = vmatpush2.msra.mxu0 0.0
    %715 = vmatprep.subr.mxu0 0.0
    %716 = vmatpush2.msra.mxu0 0.0
    %717 = vmatprep.subr.mxu0 0.0
    %718 = vmatpush2.msra.mxu0 0.0
    %719 = vmatprep.subr.mxu0 0.0
    %720 = vmatpush2.msra.mxu0 0.0
    %721 = vmatprep.subr.mxu0 0.0
    %722 = vmatpush2.msra.mxu0 0.0
    %723 = vmatprep.subr.mxu0 0.0
    %724 = vmatpush2.msra.mxu0 0.0
    %725 = vmatprep.subr.mxu0 0.0
    %726 = vmatpush2.msra.mxu0 0.0
    %727 = vmatprep.subr.mxu0 0.0
    %728 = vmatpush2.msra.mxu0 0.0
    %729 = vmatprep.subr.mxu0 0.0
    %730 = vmatpush2.msra.mxu0 0.0
    %731 = vmatprep.subr.mxu0 0.0
    %732 = vmatpush2.msra.mxu0 0.0
    %733 = vmatprep.subr.mxu0 0.0
    %734 = vmatpush2.msra.mxu0 0.0
    %735 = vmatprep.subr.mxu0 0.0
    %736 = vmatpush2.msra.mxu0 0.0
    %737 = vmatprep.subr.mxu0 0.0
    %738 = vmatpush2.msra.mxu0 0.0
    %739 = vmatprep.subr.mxu0 0.0
    %740 = vmatpush2.msra.mxu0 0.0
    %741 = vmatprep.subr.mxu0 0.0
    %742 = vmatpush2.msra.mxu0 0.0
    %743 = vmatprep.subr.mxu0 0.0
    %744 = vmatpush2.msra.mxu0 0.0
    %745 = vmatprep.mubr.f32.mxu0 0.0
    %746 = vmatmul.mubr.f32.gmra.mxu0 %v92
    %v747 = vpop.f32.mrf.mxu0
    %v748 = vadd.f32 0.0, %v747
    %v749 = vpop.f32.mrf.mxu0
    %750 = vmatprep.mubr.f32.mxu0 0.0
    %751 = vmatmul.mubr.f32.gmra.mxu0 %v95
    %v752 = vpop.f32.mrf.mxu0
    %v753 = vadd.f32 0.0, %v752
    %v754 = vpop.f32.mrf.mxu0
    %755 = vdwg.mxu0
    %v756 = vadd.f32 %v660, %v748
    %v757 = vadd.f32 %v661, %v753
    %v758 = vmax.f32 %v756, 0.0
    %v759 = vmax.f32 %v757, 0.0
    %v760 = vld [vmem:[%s2] sm:$0x3]
    %v762 = vsel %vm84, %v760, 0
    %764 = vmatprep.subr.mxu0 0.0
    %765 = vmatpush1.msra.mxu0 0.0
    %766 = vmatprep.subr.mxu0 0.0
    %767 = vmatpush1.msra.mxu0 0.0
    %768 = vmatprep.subr.mxu0 0.0
    %769 = vmatpush1.msra.mxu0 0.0
    %770 = vmatprep.subr.mxu0 0.0
    %771 = vmatpush1.msra.mxu0 0.0
    %772 = vmatprep.subr.mxu0 0.0
    %773 = vmatpush1.msra.mxu0 0.0
    %774 = vmatprep.subr.mxu0 0.0
    %775 = vmatpush1.msra.mxu0 0.0
    %776 = vmatprep.subr.mxu0 0.0
    %777 = vmatpush1.msra.mxu0 0.0
    %778 = vmatprep.subr.mxu0 0.0
    %779 = vmatpush1.msra.mxu0 0.0
    %780 = vmatprep.subr.mxu0 0.0
    %781 = vmatpush1.msra.mxu0 0.0
    %782 = vmatprep.subr.mxu0 0.0
    %783 = vmatpush1.msra.mxu0 0.0
    %784 = vmatprep.subr.mxu0 0.0
    %785 = vmatpush1.msra.mxu0 0.0
    %786 = vmatprep.subr.mxu0 0.0
    %787 = vmatpush1.msra.mxu0 0.0
    %788 = vmatprep.subr.mxu0 0.0
    %789 = vmatpush1.msra.mxu0 0.0
    %790 = vmatprep.subr.mxu0 0.0
    %791 = vmatpush1.msra.mxu0 0.0
    %792 = vmatprep.subr.mxu0 0.0
    %793 = vmatpush1.msra.mxu0 %v759
    %794 = vmatprep.subr.mxu0 0.0
    %795 = vmatpush1.msra.mxu0 %v758
    %796 = vmatprep.subr.mxu0 0.0
    %797 = vmatpush2.msra.mxu0 0.0
    %798 = vmatprep.subr.mxu0 0.0
    %799 = vmatpush2.msra.mxu0 0.0
    %800 = vmatprep.subr.mxu0 0.0
    %801 = vmatpush2.msra.mxu0 0.0
    %802 = vmatprep.subr.mxu0 0.0
    %803 = vmatpush2.msra.mxu0 0.0
    %804 = vmatprep.subr.mxu0 0.0
    %805 = vmatpush2.msra.mxu0 0.0
    %806 = vmatprep.subr.mxu0 0.0
    %807 = vmatpush2.msra.mxu0 0.0
    %808 = vmatprep.subr.mxu0 0.0
    %809 = vmatpush2.msra.mxu0 0.0
    %810 = vmatprep.subr.mxu0 0.0
    %811 = vmatpush2.msra.mxu0 0.0
    %812 = vmatprep.subr.mxu0 0.0
    %813 = vmatpush2.msra.mxu0 0.0
    %814 = vmatprep.subr.mxu0 0.0
    %815 = vmatpush2.msra.mxu0 0.0
    %816 = vmatprep.subr.mxu0 0.0
    %817 = vmatpush2.msra.mxu0 0.0
    %818 = vmatprep.subr.mxu0 0.0
    %819 = vmatpush2.msra.mxu0 0.0
    %820 = vmatprep.subr.mxu0 0.0
    %821 = vmatpush2.msra.mxu0 0.0
    %822 = vmatprep.subr.mxu0 0.0
    %823 = vmatpush2.msra.mxu0 0.0
    %824 = vmatprep.subr.mxu0 0.0
    %825 = vmatpush2.msra.mxu0 0.0
    %826 = vmatprep.subr.mxu0 0.0
    %827 = vmatpush2.msra.mxu0 0.0
    %828 = vmatprep.mubr.f32.mxu0 0.0
    %829 = vmatmul.mubr.f32.gmra.mxu0 %v762
    %v830 = vpop.f32.mrf.mxu0
    %v831 = vadd.f32 0.0, %v830
    %v832 = vpop.f32.mrf.mxu0
    %833 = vdwg.mxu0
    %v834 = vld [vmem:[%s16] sm:$0xff]
    %v835 = vld [vmem:[%s16 + $0x8] sm:$0xff]
    %v836 = vld [vmem:[%s16 + $0x10] sm:$0xff]
    %v837 = vld [vmem:[%s16 + $0x18] sm:$0xff]
    %v838 = vld [vmem:[%s17] sm:$0x1]
    %v840 = vlaneseq
    %v841 = vshrl.u32 %v840, 7
    %v842 = vsub.s32 0, %v841
    %v843 = vrot.slane %v838, %v842
    %v846 = vsel %vm288, %v831, 0
    %848 = vmatprep.subr.mxu0 0.0
    %849 = vmatpush1.msra.mxu0 0.0
    %850 = vmatprep.subr.mxu0 0.0
    %851 = vmatpush1.msra.mxu0 0.0
    %852 = vmatprep.subr.mxu0 0.0
    %853 = vmatpush1.msra.mxu0 0.0
    %854 = vmatprep.subr.mxu0 0.0
    %855 = vmatpush1.msra.mxu0 0.0
    %856 = vmatprep.subr.mxu0 0.0
    %857 = vmatpush1.msra.mxu0 0.0
    %858 = vmatprep.subr.mxu0 0.0
    %859 = vmatpush1.msra.mxu0 0.0
    %860 = vmatprep.subr.mxu0 0.0
    %861 = vmatpush1.msra.mxu0 0.0
    %862 = vmatprep.subr.mxu0 0.0
    %863 = vmatpush1.msra.mxu0 0.0
    %864 = vmatprep.subr.mxu0 0.0
    %865 = vmatpush1.msra.mxu0 0.0
    %866 = vmatprep.subr.mxu0 0.0
    %867 = vmatpush1.msra.mxu0 0.0
    %868 = vmatprep.subr.mxu0 0.0
    %869 = vmatpush1.msra.mxu0 0.0
    %870 = vmatprep.subr.mxu0 0.0
    %871 = vmatpush1.msra.mxu0 0.0
    %872 = vmatprep.subr.mxu0 0.0
    %873 = vmatpush1.msra.mxu0 %v837
    %874 = vmatprep.subr.mxu0 0.0
    %875 = vmatpush1.msra.mxu0 %v836
    %876 = vmatprep.subr.mxu0 0.0
    %877 = vmatpush1.msra.mxu0 %v835
    %878 = vmatprep.subr.mxu0 0.0
    %879 = vmatpush1.msra.mxu0 %v834
    %880 = vmatprep.subr.mxu0 0.0
    %881 = vmatpush2.msra.mxu0 0.0
    %882 = vmatprep.subr.mxu0 0.0
    %883 = vmatpush2.msra.mxu0 0.0
    %884 = vmatprep.subr.mxu0 0.0
    %885 = vmatpush2.msra.mxu0 0.0
    %886 = vmatprep.subr.mxu0 0.0
    %887 = vmatpush2.msra.mxu0 0.0
    %888 = vmatprep.subr.mxu0 0.0
    %889 = vmatpush2.msra.mxu0 0.0
    %890 = vmatprep.subr.mxu0 0.0
    %891 = vmatpush2.msra.mxu0 0.0
    %892 = vmatprep.subr.mxu0 0.0
    %893 = vmatpush2.msra.mxu0 0.0
    %894 = vmatprep.subr.mxu0 0.0
    %895 = vmatpush2.msra.mxu0 0.0
    %896 = vmatprep.subr.mxu0 0.0
    %897 = vmatpush2.msra.mxu0 0.0
    %898 = vmatprep.subr.mxu0 0.0
    %899 = vmatpush2.msra.mxu0 0.0
    %900 = vmatprep.subr.mxu0 0.0
    %901 = vmatpush2.msra.mxu0 0.0
    %902 = vmatprep.subr.mxu0 0.0
    %903 = vmatpush2.msra.mxu0 0.0
    %904 = vmatprep.subr.mxu0 0.0
    %905 = vmatpush2.msra.mxu0 0.0
    %906 = vmatprep.subr.mxu0 0.0
    %907 = vmatpush2.msra.mxu0 0.0
    %908 = vmatprep.subr.mxu0 0.0
    %909 = vmatpush2.msra.mxu0 0.0
    %910 = vmatprep.subr.mxu0 0.0
    %911 = vmatpush2.msra.mxu0 0.0
    %912 = vmatprep.mubr.f32.mxu0 0.0
    %913 = vmatmul.mubr.f32.gmra.mxu0 %v846
    %v914 = vpop.f32.mrf.mxu0
    %v915 = vadd.f32 %v843, %v914
    %v916 = vpop.f32.mrf.mxu0
    %917 = vdwg.mxu0
    %v918 = vld [vmem:[%s18] sm:$0xff]
    %v919 = vld [vmem:[%s18 + $0x8] sm:$0xff]
    %v920 = vld [vmem:[%s18 + $0x10] sm:$0xff]
    %v921 = vld [vmem:[%s18 + $0x18] sm:$0xff]
    %v922 = vld [vmem:[%s19] sm:$0x1]
    %v924 = vlaneseq
    %v925 = vshrl.u32 %v924, 7
    %v926 = vsub.s32 0, %v925
    %v927 = vrot.slane %v922, %v926
    %v930 = vsel %vm288, %v915, 0
    %932 = vmatprep.subr.mxu0 0.0
    %933 = vmatpush1.msra.mxu0 0.0
    %934 = vmatprep.subr.mxu0 0.0
    %935 = vmatpush1.msra.mxu0 0.0
    %936 = vmatprep.subr.mxu0 0.0
    %937 = vmatpush1.msra.mxu0 0.0
    %938 = vmatprep.subr.mxu0 0.0
    %939 = vmatpush1.msra.mxu0 0.0
    %940 = vmatprep.subr.mxu0 0.0
    %941 = vmatpush1.msra.mxu0 0.0
    %942 = vmatprep.subr.mxu0 0.0
    %943 = vmatpush1.msra.mxu0 0.0
    %944 = vmatprep.subr.mxu0 0.0
    %945 = vmatpush1.msra.mxu0 0.0
    %946 = vmatprep.subr.mxu0 0.0
    %947 = vmatpush1.msra.mxu0 0.0
    %948 = vmatprep.subr.mxu0 0.0
    %949 = vmatpush1.msra.mxu0 0.0
    %950 = vmatprep.subr.mxu0 0.0
    %951 = vmatpush1.msra.mxu0 0.0
    %952 = vmatprep.subr.mxu0 0.0
    %953 = vmatpush1.msra.mxu0 0.0
    %954 = vmatprep.subr.mxu0 0.0
    %955 = vmatpush1.msra.mxu0 0.0
    %956 = vmatprep.subr.mxu0 0.0
    %957 = vmatpush1.msra.mxu0 %v921
    %958 = vmatprep.subr.mxu0 0.0
    %959 = vmatpush1.msra.mxu0 %v920
    %960 = vmatprep.subr.mxu0 0.0
    %961 = vmatpush1.msra.mxu0 %v919
    %962 = vmatprep.subr.mxu0 0.0
    %963 = vmatpush1.msra.mxu0 %v918
    %964 = vmatprep.subr.mxu0 0.0
    %965 = vmatpush2.msra.mxu0 0.0
    %966 = vmatprep.subr.mxu0 0.0
    %967 = vmatpush2.msra.mxu0 0.0
    %968 = vmatprep.subr.mxu0 0.0
    %969 = vmatpush2.msra.mxu0 0.0
    %970 = vmatprep.subr.mxu0 0.0
    %971 = vmatpush2.msra.mxu0 0.0
    %972 = vmatprep.subr.mxu0 0.0
    %973 = vmatpush2.msra.mxu0 0.0
    %974 = vmatprep.subr.mxu0 0.0
    %975 = vmatpush2.msra.mxu0 0.0
    %976 = vmatprep.subr.mxu0 0.0
    %977 = vmatpush2.msra.mxu0 0.0
    %978 = vmatprep.subr.mxu0 0.0
    %979 = vmatpush2.msra.mxu0 0.0
    %980 = vmatprep.subr.mxu0 0.0
    %981 = vmatpush2.msra.mxu0 0.0
    %982 = vmatprep.subr.mxu0 0.0
    %983 = vmatpush2.msra.mxu0 0.0
    %984 = vmatprep.subr.mxu0 0.0
    %985 = vmatpush2.msra.mxu0 0.0
    %986 = vmatprep.subr.mxu0 0.0
    %987 = vmatpush2.msra.mxu0 0.0
    %988 = vmatprep.subr.mxu0 0.0
    %989 = vmatpush2.msra.mxu0 0.0
    %990 = vmatprep.subr.mxu0 0.0
    %991 = vmatpush2.msra.mxu0 0.0
    %992 = vmatprep.subr.mxu0 0.0
    %993 = vmatpush2.msra.mxu0 0.0
    %994 = vmatprep.subr.mxu0 0.0
    %995 = vmatpush2.msra.mxu0 0.0
    %996 = vmatprep.mubr.f32.mxu0 0.0
    %997 = vmatmul.mubr.f32.gmra.mxu0 %v930
    %v998 = vpop.f32.mrf.mxu0
    %v999 = vadd.f32 %v927, %v998
    %v1000 = vpop.f32.mrf.mxu0
    %1001 = vdwg.mxu0
    %vm1002 = vcmask 25600
    %v1003 = vsel %vm1002, %v999, -inf
    %1004 = vmax.xlane.f32.xlu0 %v1003
    %v1005 = vpop.xlane.xlu0 %1004
    %v1006 = vsub.f32 %v999, %v1005
    %v1007 = vmul.f32 %v1006, 1.442695
    %v1008 = vpow.pop %v1007
    %v1009 = vsel %vm1002, %v1008, 0.0
    %1010 = vadd.xlane.f32.xlu0 %v1009
    %v1011 = vpop.xlane.xlu0 %1010
    %v1012 = vlog2.pop %v1011
    %v1013 = vmul.f32 %v1012, 0.6931472
    %v1014 = vsub.f32 %v1006, %v1013
    %1015 = vst.msk [vmem:[#allocation5] sm:$0x3] %vm1002, %v1014
    // Predicated region
    $region86: #{gnn_stack_forward.1} parent=1 // pred_check
      _
    $region87: #{gnn_stack_forward.1} parent=1 // pred_check_branch
      %1017 = sbr.rel (0) target = $region89
    $region88: #{gnn_stack_forward.1} parent=1 // pred_region
      %s1019 = ssub.s32 32, 32
      %1020 = vsyncadd [#allocation4], %s1019
      %s1022 = sshll.u32 [#allocation5], 4
      %s1023 = int_to_ptr.vmem [resolvable:$true] %s1022
      %1025 = dma.vmem_to_hbm [thread:$0]  %s1023, 32, %s20, [#allocation4]
    $region89: #{gnn_stack_forward.1} parent=1 // pred_fallthru
      _
    // Predicated region
    $region90: #{gnn_stack_forward.1} parent=1 // pred_check
      _
    $region91: #{gnn_stack_forward.1} parent=1 // pred_check_branch
      %1027 = sbr.rel (0) target = $region93
    $region92: #{gnn_stack_forward.1} parent=1 // pred_region
      %1028 = dma.done [#allocation4], 32
    $region93: #{gnn_stack_forward.1} parent=1 // pred_fallthru
      _
    %1029 = vsyncpa [#allocation3], 1
    %1030 = vsyncpa [#allocation4], 1

</llo_original>
